<compile_context>
chip_gen: v7x
topology: tpu7x:2x2x1
jax: 0.10.0
libtpu: 0.0.40
codegen_flags: <defaults>
</compile_context>

<pallas_src>
import jax
import jax.numpy as jnp
from jax.experimental import pallas as pl
from jax.experimental.pallas import tpu as pltpu

NEG_SLOPE = 0.01  # nn.LeakyReLU default


def _round_up(n, m):
    return ((n + m - 1) // m) * m


# --------------------------- Pallas kernel -----------------------------------
def _fused_mlp_kernel(x_ref, w0_ref, w1_ref, w2_ref, b_ref,
                      om_ref, os_ref, op_ref):
    """x:(tm,48) -> mean/scale/prob:(tm,k) in final (interleaved) layout.

    Three-layer fused MLP; both original MLPs run block-diagonally in one
    matmul chain. Bias rows: b_ref[0,:n0], b_ref[1,:n1], b_ref[2,:] (layer 2
    bias also carries the constant d0 context on its zero-weight columns).
    """
    n0 = w0_ref.shape[1]
    n1 = w1_ref.shape[1]
    k = om_ref.shape[1]

    b = b_ref[...]
    x = x_ref[...]

    h = jnp.dot(x, w0_ref[...], preferred_element_type=jnp.float32) + b[0:1, 0:n0]
    h = jnp.maximum(h, NEG_SLOPE * h)                   # leaky_relu, 2 VPU ops
    h = jnp.dot(h, w1_ref[...], preferred_element_type=jnp.float32) + b[1:2, 0:n1]
    h = jnp.maximum(h, NEG_SLOPE * h)
    o = jnp.dot(h, w2_ref[...], preferred_element_type=jnp.float32) + b[2:3, :]

    om_ref[...] = o[:, 0:k].astype(om_ref.dtype)
    os_ref[...] = o[:, k:2 * k].astype(os_ref.dtype)
    op_ref[...] = o[:, 2 * k:3 * k].astype(op_ref.dtype)


# --------------------------- weight fusion ------------------------------------
def _build_fused_params(params, to_dec):
    """Build fused weights so the whole module is one 3-layer matmul chain.

    Layer-0 weight rows follow shs_q's native column order (3i -> d0 channel i,
    3i+1 -> d1 channel i, 3i+2 -> unused), so no input gather is needed.
    For to_dec == -1 the layer-2 weight/bias are permuted into the final
    interleaved [mean(48) || scale(48) || prob(48)] layout, with mean_d0 /
    scale_d0 / prob_d0 baked into bias-only columns.
    """
    f32 = jnp.float32
    w0_0 = params["w0_0"].astype(f32)    # (16, 48)
    w1_0 = params["w1_0"].astype(f32)    # (32, 48)
    z16x48 = jnp.zeros((16, 48), f32)

    if to_dec == 1:                      # MLP_d0 only: input is d0 (cols 3i)
        w0 = jnp.stack([w0_0, z16x48, z16x48], axis=1).reshape(48, 48)
        w1 = params["w0_1"].astype(f32)
        w2 = params["w0_2"].astype(f32)
        b = jnp.concatenate(
            [params["b0_0"], params["b0_1"], params["b0_2"]], axis=0).astype(f32)   # (3,48)
        return w0, w1, w2, b

    if to_dec == 2:                      # MLP_d1 only: input is [d0, d1]
        w0 = jnp.stack([w1_0[:16], w1_0[16:], z16x48], axis=1).reshape(48, 48)
        w1 = params["w1_1"].astype(f32)
        w2 = params["w1_2"].astype(f32)
        b = jnp.concatenate(
            [params["b1_0"], params["b1_1"], params["b1_2"]], axis=0).astype(f32)   # (3,48)
        return w0, w1, w2, b

    # ---- full path (to_dec == -1): both MLPs, final interleaved layout ----
    # Layer 0: (48 in) -> (96 out) = [MLP_d0 hidden || MLP_d1 hidden]
    row_d0 = jnp.concatenate([w0_0, w1_0[:16]], axis=1)        # (16, 96)
    row_d1 = jnp.concatenate([z16x48, w1_0[16:]], axis=1)      # (16, 96)
    row_d2 = jnp.zeros((16, 96), f32)
    w0 = jnp.stack([row_d0, row_d1, row_d2], axis=1).reshape(48, 96)

    z48 = jnp.zeros((48, 48), f32)

    def blkdiag(a, bmat):
        return jnp.concatenate(
            [jnp.concatenate([a.astype(f32), z48], axis=1),
             jnp.concatenate([z48, bmat.astype(f32)], axis=1)], axis=0)   # (96, 96)

    w1 = blkdiag(params["w0_1"], params["w1_1"])               # (96, 96)

    # Layer 2: block-diagonal, then column-permute into the final interleaved
    # [mean || scale || prob] layout and append the constant-d0 bias columns.
    w2c = blkdiag(params["w0_2"], params["w1_2"])              # (96, 96)
    b2c = jnp.concatenate([params["b0_2"], params["b1_2"]], axis=1).astype(f32)  # (1, 96)

    def il_cols(x0, x1, x2):   # interleave three equal-width blocks column-wise
        return jnp.stack([x0, x1, x2], axis=-1).reshape(x0.shape[0], -1)

    zcol = jnp.zeros((96, 16), f32)
    w2 = jnp.concatenate([
        il_cols(zcol, w2c[:, 0:16],  w2c[:, 48:64]),    # mean:  [d0(const), d1, d2]
        il_cols(zcol, w2c[:, 16:32], w2c[:, 64:80]),    # scale
        il_cols(zcol, w2c[:, 32:48], w2c[:, 80:96]),    # prob
    ], axis=1)                                                          # (96, 144)

    b2 = jnp.concatenate([
        il_cols(params["mean_d0"].astype(f32),  b2c[:, 0:16],  b2c[:, 48:64]),
        il_cols(params["scale_d0"].astype(f32), b2c[:, 16:32], b2c[:, 64:80]),
        il_cols(params["prob_d0"].astype(f32),  b2c[:, 32:48], b2c[:, 80:96]),
    ], axis=1)                                                          # (1, 144)

    b0f = jnp.concatenate([params["b0_0"], params["b1_0"]], axis=1).astype(f32)  # (1, 96)
    b1f = jnp.concatenate([params["b0_1"], params["b1_1"]], axis=1).astype(f32)  # (1, 96)
    pad48 = jnp.zeros((1, 48), f32)
    b = jnp.concatenate([
        jnp.concatenate([b0f, pad48], axis=1),
        jnp.concatenate([b1f, pad48], axis=1),
        b2,
    ], axis=0)                                                          # (3, 144)
    return w0, w1, w2, b


# --------------------------- wrapper ------------------------------------------
def channel_ctx_feq_forward(shs_q, params, to_dec=-1, tm=8192, out_dtype=jnp.float32):
    """Pallas implementation of Channel_CTX_feq.forward.

    Returns (mean, scale, prob): shapes (NN, 48) for to_dec == -1, (NN, 16)
    for to_dec in {0, 1, 2}. `to_dec` must stay a static (Python) argument.
    """
    NN = shs_q.shape[0]

    # to_dec == 0 needs only the broadcast parameters — no kernel work at all.
    if to_dec == 0:
        md0 = jnp.broadcast_to(params["mean_d0"].astype(out_dtype), (NN, 16))
        sd0 = jnp.broadcast_to(params["scale_d0"].astype(out_dtype), (NN, 16))
        pd0 = jnp.broadcast_to(params["prob_d0"].astype(out_dtype), (NN, 16))
        return md0, sd0, pd0

    x = jnp.asarray(shs_q, jnp.float32)                 # (NN, 48), no gather/copy
    w0, w1, w2, b = _build_fused_params(params, to_dec)
    n0, n1, n2 = w0.shape[1], w1.shape[1], w2.shape[1]
    k = n2 // 3                                         # 48 (full) or 16 (decode)

    # Row tile: large (amortize ~0.35us/step pipeline overhead), multiple of 8,
    # capped at ceil(NN/2) so the grid has >=2 steps (both v7x TCs get work).
    tm_eff = max(8, min(tm, _round_up((NN + 1) // 2, 8)))
    grid = (pl.cdiv(NN, tm_eff),)                       # ragged last block OK

    def const_spec(shape):
        return pl.BlockSpec(shape, lambda i: (0, 0))

    row_in = pl.BlockSpec((tm_eff, 48), lambda i: (i, 0))
    row_out = pl.BlockSpec((tm_eff, k), lambda i: (i, 0))
    out_sds = jax.ShapeDtypeStruct((NN, k), out_dtype)

    mean, scale, prob = pl.pallas_call(
        _fused_mlp_kernel,
        out_shape=(out_sds, out_sds, out_sds),
        grid_spec=pltpu.PrefetchScalarGridSpec(
            num_scalar_prefetch=0,
            grid=grid,
            in_specs=[
                row_in,                 # shs_q rows
                const_spec((48, n0)),   # fused layer 0 weight
                const_spec((n0, n1)),   # fused layer 1 weight
                const_spec((n1, n2)),   # fused layer 2 weight (interleaved cols)
                const_spec((3, n2)),    # all three biases (+ d0 constants)
            ],
            out_specs=[row_out, row_out, row_out],
        ),
        compiler_params=pltpu.CompilerParams(
            dimension_semantics=("parallel",),          # rows independent; v7x 2-TC
            vmem_limit_bytes=32 * 1024 * 1024,          # explicit, v7x-safe budget
        ),
    )(x, w0, w1, w2, b)
    return mean, scale, prob


# ----------------------- reference (pure JAX) ---------------------------------
def reference_forward(shs_q, params):
    NN = shs_q.shape[0]
    shs3 = shs_q.reshape(NN, 16, 3)
    d0, d1 = shs3[..., 0], shs3[..., 1]

    def mlp(x, names):
        h = x @ params[names[0]] + params[names[1]]
        h = jnp.where(h > 0, h, NEG_SLOPE * h)
        h = h @ params[names[2]] + params[names[3]]
        h = jnp.where(h > 0, h, NEG_SLOPE * h)
        return h @ params[names[4]] + params[names[5]]

    md0 = jnp.broadcast_to(params["mean_d0"], (NN, 16))
    sd0 = jnp.broadcast_to(params["scale_d0"], (NN, 16))
    pd0 = jnp.broadcast_to(params["prob_d0"], (NN, 16))

    o0 = mlp(d0, ["w0_0", "b0_0", "w0_1", "b0_1", "w0_2", "b0_2"])
    o1 = mlp(jnp.concatenate([d0, d1], -1),
             ["w1_0", "b1_0", "w1_1", "b1_1", "w1_2", "b1_2"])
    md1, sd1, pd1 = o0[:, 0:16], o0[:, 16:32], o0[:, 32:48]
    md2, sd2, pd2 = o1[:, 0:16], o1[:, 16:32], o1[:, 32:48]

    mean = jnp.stack([md0, md1, md2], -1).reshape(NN, -1)
    scale = jnp.stack([sd0, sd1, sd2], -1).reshape(NN, -1)
    prob = jnp.stack([pd0, pd1, pd2], -1).reshape(NN, -1)
    return mean, scale, prob


def init_params(key):
    """Deterministic synthetic parameters matching the module's shapes."""
    ks = jax.random.split(key, 16)

    def u(k, shape, fan_in):
        bound = 1.0 / (fan_in ** 0.5)
        return jax.random.uniform(k, shape, jnp.float32, -bound, bound)

    return {
        "mean_d0":  u(ks[0], (1, 16), 16),
        "scale_d0": u(ks[1], (1, 16), 16),
        "prob_d0":  u(ks[2], (1, 16), 16),
        # MLP_d0: Linear(16,48), Linear(48,48), Linear(48,48)  (weights stored (in, out))
        "w0_0": u(ks[3], (16, 48), 16), "b0_0": u(ks[4], (1, 48), 16),
        "w0_1": u(ks[5], (48, 48), 48), "b0_1": u(ks[6], (1, 48), 48),
        "w0_2": u(ks[7], (48, 48), 48), "b0_2": u(ks[8], (1, 48), 48),
        # MLP_d1: Linear(32,48), Linear(48,48), Linear(48,48)
        "w1_0": u(ks[9], (32, 48), 32), "b1_0": u(ks[10], (1, 48), 32),
        "w1_1": u(ks[11], (48, 48), 48), "b1_1": u(ks[12], (1, 48), 48),
        "w1_2": u(ks[13], (48, 48), 48), "b1_2": u(ks[14], (1, 48), 48),
    }


if __name__ == "__main__":
    key = jax.random.PRNGKey(0)
    k_in, k_par = jax.random.split(key)

    NN = 22                 # deliberately NOT a multiple of 8 -> exercises ragged last block
    shs_q = jax.random.normal(k_in, (NN, 48), jnp.float32)
    params = init_params(k_par)

    fwd = jax.jit(channel_ctx_feq_forward,
                  static_argnames=("to_dec", "tm", "out_dtype"))

    # full path
    mean, scale, prob = fwd(shs_q, params, to_dec=-1)
    jax.block_until_ready((mean, scale, prob))

    mean_r, scale_r, prob_r = reference_forward(shs_q, params)
    assert mean.shape == (NN, 48) and scale.shape == (NN, 48) and prob.shape == (NN, 48)
    assert jnp.allclose(mean, mean_r, atol=1e-5, rtol=1e-5)
    assert jnp.allclose(scale, scale_r, atol=1e-5, rtol=1e-5)
    assert jnp.allclose(prob, prob_r, atol=1e-5, rtol=1e-5)

    mean3 = mean_r.reshape(NN, 16, 3)
    scale3 = scale_r.reshape(NN, 16, 3)
    prob3 = prob_r.reshape(NN, 16, 3)

    # decode path: d1 level
    m1, s1, p1 = fwd(shs_q, params, to_dec=1)
    jax.block_until_ready((m1, s1, p1))
    assert m1.shape == (NN, 16)
    assert jnp.allclose(m1, mean3[..., 1], atol=1e-5, rtol=1e-5)
    assert jnp.allclose(s1, scale3[..., 1], atol=1e-5, rtol=1e-5)
    assert jnp.allclose(p1, prob3[..., 1], atol=1e-5, rtol=1e-5)

    # decode path: d2 level
    m2, s2, p2 = fwd(shs_q, params, to_dec=2)
    jax.block_until_ready((m2, s2, p2))
    assert jnp.allclose(m2, mean3[..., 2], atol=1e-5, rtol=1e-5)
    assert jnp.allclose(s2, scale3[..., 2], atol=1e-5, rtol=1e-5)
    assert jnp.allclose(p2, prob3[..., 2], atol=1e-5, rtol=1e-5)

    # decode path: d0 level (constants only, no kernel)
    m0, s0, p0 = fwd(shs_q, params, to_dec=0)
    jax.block_until_ready((m0, s0, p0))
    assert jnp.allclose(m0, mean3[..., 0], atol=1e-6)
    assert jnp.allclose(s0, scale3[..., 0], atol=1e-6)
    assert jnp.allclose(p0, prob3[..., 0], atol=1e-6)

    print("KERNEL_OK")
</pallas_src>

<mosaic_0001>
module attributes {stable_mosaic.version = 11 : i64} {
  func.func @_fused_mlp_kernel(%arg0: i32, %arg1: memref<16x48xf32, #tpu.memory_space<vmem>>, %arg2: memref<48x96xf32, #tpu.memory_space<vmem>>, %arg3: memref<96x96xf32, #tpu.memory_space<vmem>>, %arg4: memref<96x144xf32, #tpu.memory_space<vmem>>, %arg5: memref<3x144xf32, #tpu.memory_space<vmem>>, %arg6: memref<16x48xf32, #tpu.memory_space<vmem>>, %arg7: memref<16x48xf32, #tpu.memory_space<vmem>>, %arg8: memref<16x48xf32, #tpu.memory_space<vmem>>) attributes {dimension_semantics = [#tpu.dimension_semantics<parallel>], iteration_bounds = array<i64: 2>, scalar_prefetch = 0 : i64, scratch_operands = 0 : i64, tpu.core_type = #tpu.core_type<tc>, window_params = [{transform_indices = @transform_0, window_bounds = array<i64: 16, 48>}, {pipeline_mode = #tpu.pipeline_mode<synchronous>, transform_indices = @transform_1, window_bounds = array<i64: 48, 96>}, {pipeline_mode = #tpu.pipeline_mode<synchronous>, transform_indices = @transform_2, window_bounds = array<i64: 96, 96>}, {pipeline_mode = #tpu.pipeline_mode<synchronous>, transform_indices = @transform_3, window_bounds = array<i64: 96, 144>}, {pipeline_mode = #tpu.pipeline_mode<synchronous>, transform_indices = @transform_4, window_bounds = array<i64: 3, 144>}, {transform_indices = @transform_5, window_bounds = array<i64: 16, 48>}, {transform_indices = @transform_6, window_bounds = array<i64: 16, 48>}, {transform_indices = @transform_7, window_bounds = array<i64: 16, 48>}]} {
    %c0 = arith.constant 0 : index
    %c0_0 = arith.constant 0 : index
    %0 = vector.load %arg5[%c0, %c0_0] : memref<3x144xf32, #tpu.memory_space<vmem>>, vector<3x144xf32>
    %c0_1 = arith.constant 0 : index
    %c0_2 = arith.constant 0 : index
    %1 = vector.load %arg1[%c0_1, %c0_2] : memref<16x48xf32, #tpu.memory_space<vmem>>, vector<16x48xf32>
    %c0_3 = arith.constant 0 : index
    %c0_4 = arith.constant 0 : index
    %2 = vector.load %arg2[%c0_3, %c0_4] : memref<48x96xf32, #tpu.memory_space<vmem>>, vector<48x96xf32>
    %cst = arith.constant dense<0.000000e+00> : vector<16x96xf32>
    %3 = tpu.matmul %1, %2, %cst {dimension_numbers = #tpu.dot_dimension_numbers<[1], [0], [0], [1], [0, 0, 1, 1], [], []>} : vector<16x48xf32>, vector<48x96xf32>, vector<16x96xf32> -> vector<16x96xf32>
    %4 = vector.extract_strided_slice %0 {offsets = [0, 0], sizes = [1, 96], strides = [1, 1]} : vector<3x144xf32> to vector<1x96xf32>
    %5 = vector.broadcast %4 : vector<1x96xf32> to vector<16x96xf32>
    %6 = arith.addf %3, %5 : vector<16x96xf32>
    %cst_5 = arith.constant 0.00999999977 : f32
    %7 = vector.broadcast %cst_5 : f32 to vector<16x96xf32>
    %8 = arith.mulf %7, %6 : vector<16x96xf32>
    %9 = arith.maximumf %6, %8 : vector<16x96xf32>
    %c0_6 = arith.constant 0 : index
    %c0_7 = arith.constant 0 : index
    %10 = vector.load %arg3[%c0_6, %c0_7] : memref<96x96xf32, #tpu.memory_space<vmem>>, vector<96x96xf32>
    %cst_8 = arith.constant dense<0.000000e+00> : vector<16x96xf32>
    %11 = tpu.matmul %9, %10, %cst_8 {dimension_numbers = #tpu.dot_dimension_numbers<[1], [0], [0], [1], [0, 0, 1, 1], [], []>} : vector<16x96xf32>, vector<96x96xf32>, vector<16x96xf32> -> vector<16x96xf32>
    %12 = vector.extract_strided_slice %0 {offsets = [1, 0], sizes = [1, 96], strides = [1, 1]} : vector<3x144xf32> to vector<1x96xf32>
    %13 = vector.broadcast %12 : vector<1x96xf32> to vector<16x96xf32>
    %14 = arith.addf %11, %13 : vector<16x96xf32>
    %cst_9 = arith.constant 0.00999999977 : f32
    %15 = vector.broadcast %cst_9 : f32 to vector<16x96xf32>
    %16 = arith.mulf %15, %14 : vector<16x96xf32>
    %17 = arith.maximumf %14, %16 : vector<16x96xf32>
    %c0_10 = arith.constant 0 : index
    %c0_11 = arith.constant 0 : index
    %18 = vector.load %arg4[%c0_10, %c0_11] : memref<96x144xf32, #tpu.memory_space<vmem>>, vector<96x144xf32>
    %cst_12 = arith.constant dense<0.000000e+00> : vector<16x144xf32>
    %19 = tpu.matmul %17, %18, %cst_12 {dimension_numbers = #tpu.dot_dimension_numbers<[1], [0], [0], [1], [0, 0, 1, 1], [], []>} : vector<16x96xf32>, vector<96x144xf32>, vector<16x144xf32> -> vector<16x144xf32>
    %20 = vector.extract_strided_slice %0 {offsets = [2, 0], sizes = [1, 144], strides = [1, 1]} : vector<3x144xf32> to vector<1x144xf32>
    %21 = vector.broadcast %20 : vector<1x144xf32> to vector<16x144xf32>
    %22 = arith.addf %19, %21 : vector<16x144xf32>
    %23 = vector.extract_strided_slice %22 {offsets = [0, 0], sizes = [16, 48], strides = [1, 1]} : vector<16x144xf32> to vector<16x48xf32>
    %c0_13 = arith.constant 0 : index
    %c0_14 = arith.constant 0 : index
    %24 = vector.load %arg6[%c0_13, %c0_14] : memref<16x48xf32, #tpu.memory_space<vmem>>, vector<16x48xf32>
    tpu.vector_store %arg6[%c0_13, %c0_14], %23 {strides = array<i32>} : memref<16x48xf32, #tpu.memory_space<vmem>>, vector<16x48xf32>,
    %25 = vector.extract_strided_slice %22 {offsets = [0, 48], sizes = [16, 48], strides = [1, 1]} : vector<16x144xf32> to vector<16x48xf32>
    %c0_15 = arith.constant 0 : index
    %c0_16 = arith.constant 0 : index
    %26 = vector.load %arg7[%c0_15, %c0_16] : memref<16x48xf32, #tpu.memory_space<vmem>>, vector<16x48xf32>
    tpu.vector_store %arg7[%c0_15, %c0_16], %25 {strides = array<i32>} : memref<16x48xf32, #tpu.memory_space<vmem>>, vector<16x48xf32>,
    %27 = vector.extract_strided_slice %22 {offsets = [0, 96], sizes = [16, 48], strides = [1, 1]} : vector<16x144xf32> to vector<16x48xf32>
    %c0_17 = arith.constant 0 : index
    %c0_18 = arith.constant 0 : index
    %28 = vector.load %arg8[%c0_17, %c0_18] : memref<16x48xf32, #tpu.memory_space<vmem>>, vector<16x48xf32>
    tpu.vector_store %arg8[%c0_17, %c0_18], %27 {strides = array<i32>} : memref<16x48xf32, #tpu.memory_space<vmem>>, vector<16x48xf32>,
    return
  }
  func.func @transform_0(%arg0: i32) -> (i32, i32) {
    %c0_i32 = arith.constant 0 : i32
    %c0_i32_0 = arith.constant 0 : i32
    return %arg0, %c0_i32 : i32, i32
  }
  func.func @transform_1(%arg0: i32) -> (i32, i32) {
    %c0_i32 = arith.constant 0 : i32
    %c0_i32_0 = arith.constant 0 : i32
    %c0_i32_1 = arith.constant 0 : i32
    return %c0_i32, %c0_i32_0 : i32, i32
  }
  func.func @transform_2(%arg0: i32) -> (i32, i32) {
    %c0_i32 = arith.constant 0 : i32
    %c0_i32_0 = arith.constant 0 : i32
    %c0_i32_1 = arith.constant 0 : i32
    return %c0_i32, %c0_i32_0 : i32, i32
  }
  func.func @transform_3(%arg0: i32) -> (i32, i32) {
    %c0_i32 = arith.constant 0 : i32
    %c0_i32_0 = arith.constant 0 : i32
    %c0_i32_1 = arith.constant 0 : i32
    return %c0_i32, %c0_i32_0 : i32, i32
  }
  func.func @transform_4(%arg0: i32) -> (i32, i32) {
    %c0_i32 = arith.constant 0 : i32
    %c0_i32_0 = arith.constant 0 : i32
    %c0_i32_1 = arith.constant 0 : i32
    return %c0_i32, %c0_i32_0 : i32, i32
  }
  func.func @transform_5(%arg0: i32) -> (i32, i32) {
    %c0_i32 = arith.constant 0 : i32
    %c0_i32_0 = arith.constant 0 : i32
    return %arg0, %c0_i32 : i32, i32
  }
  func.func @transform_6(%arg0: i32) -> (i32, i32) {
    %c0_i32 = arith.constant 0 : i32
    %c0_i32_0 = arith.constant 0 : i32
    return %arg0, %c0_i32 : i32, i32
  }
  func.func @transform_7(%arg0: i32) -> (i32, i32) {
    %c0_i32 = arith.constant 0 : i32
    %c0_i32_0 = arith.constant 0 : i32
    return %arg0, %c0_i32 : i32, i32
  }
}

</mosaic_0001>

<llo_original>
// kernel: channel_ctx_feq_forward.1
$region0: #{channel_ctx_feq_forward.1}
  #allocation0 [shape = 'u32[]', space=smem, size = 0x4, offset = 0x4, fixed_abs, tag = 'smem constant byte address 0x4 - core index']
  #allocation1 [shape = 'u32[144,128]{1,0:T(1,128)}', space=vmem, size = 0x12000, scoped, tag = 'internal scratch']
  %s0 = inlined_call_operand.vmem [shape: f32[22,48], index: 0, kind: input, shape index: {}]
  %s1 = inlined_call_operand.vmem [shape: f32[48,96], index: 1, kind: input, shape index: {}]
  %s2 = inlined_call_operand.vmem [shape: f32[96,96], index: 2, kind: input, shape index: {}]
  %s3 = inlined_call_operand.vmem [shape: f32[96,144], index: 3, kind: input, shape index: {}]
  %s4 = inlined_call_operand.vmem [shape: f32[3,144], index: 4, kind: input, shape index: {}]
  %s5 = inlined_call_operand.hbm [shape: f32[22,48], index: 5, kind: output, shape index: {0}]
  %s6 = inlined_call_operand.hbm [shape: f32[22,48], index: 6, kind: output, shape index: {1}]
  %s7 = inlined_call_operand.hbm [shape: f32[22,48], index: 7, kind: output, shape index: {2}]
  %8 = xla_tuple %s5, %s6, %s7
  %s9 = sld [smem:[#allocation0]]
  $region69: #{channel_ctx_feq_forward.1} parent=0
    _
  %s11 = ssub.s32 1, %s9
  %s12 = scalar_select 0, %s11, %s9
  $region1: #{channel_ctx_feq_forward.1} parent=0
    #allocation2 [shape = 'u8[16384]{0}', space=vmem, size = 0x4000, scoped, tag = 'output window, operand 0']
    #allocation3 [shape = 's32[2]{0}', space=sflag, size = 0x8, scoped, tag = 'scoped memory for channel_ctx_feq_forward.1']
    #allocation4 [shape = 'u8[16384]{0}', space=vmem, size = 0x4000, scoped, tag = 'output window, operand 1']
    #allocation5 [shape = 's32[2]{0}', space=sflag, size = 0x8, scoped, tag = 'scoped memory for channel_ctx_feq_forward.1']
    #allocation6 [shape = 'u8[16384]{0}', space=vmem, size = 0x4000, scoped, tag = 'output window, operand 2']
    %13 = vsyncpa [#allocation3], 0
    %s14 = scalar_lea.sflag [#allocation3], 1
    %15 = vsyncpa %s14, 0
    %16 = vsyncpa [#allocation5], 0
    %s17 = scalar_lea.sflag [#allocation5], 1
    %18 = vsyncpa %s17, 0
    loop: start=0, step=1, limit=4
    $region2: #{channel_ctx_feq_forward.1} parent=1 // loop_pre_header
      _
    $region3: #{channel_ctx_feq_forward.1} parent=1 // loop_header
      %s20 = sphi 0, %s24
      %p21 = scmp.ge.s32.totalorder %s20, 4
      %s30 = sphi 0, %s32
      %s33 = sphi 0, %s30
      %s34 = sphi 0, %s33
      %s50 = sphi 0, %s34
      %s54 = sphi 0, %s54
      %s56 = sphi 0, %s54
      %s57 = sphi 0, %s56
      %s71 = sphi 0, %s57
      %s75 = sphi 0, %s75
      %s77 = sphi 0, %s75
      %s78 = sphi 0, %s77
      %s92 = sphi 0, %s78
      %s96 = sphi 0, %s96
      %s98 = sphi 0, %s96
      %s99 = sphi 0, %s98
      %s113 = sphi 0, %s99
      %s117 = sphi 0, %s117
      %s119 = sphi 0, %s117
      %s120 = sphi 0, %s119
      %s134 = sphi 0, %s120
      %s140 = sphi 0, %s142
      %s143 = sphi 0, %s140
      %s144 = sphi 0, %s143
      %s160 = sphi 0, %s144
      %s166 = sphi 0, %s168
      %s169 = sphi 0, %s166
      %s170 = sphi 0, %s169
      %s186 = sphi 0, %s170
      %s192 = sphi 0, %s194
      %s195 = sphi 0, %s192
      %s196 = sphi 0, %s195
      %s212 = sphi 0, %s196
    $region4: #{channel_ctx_feq_forward.1} parent=1 // loop_header_branch
      %23 = sbr.rel (%p21) target = $region8
    $region5: #{channel_ctx_feq_forward.1} parent=1 // loop_body
      %s25 = ssub.s32 %s20, 1
      %s26 = ssub.s32 %s20, 2
      %s27 = sadd.s32 %s20, 1
      %s28 = ssub.s32 %s20, %s27
      %p29 = scmp.eq.s32.totalorder %s28, 0
      %s31 = sadd.s32 %s30, 1
      %s32 = scalar_select %p29, %s30, %s31
      %p35 = pneg %p29
      %p36 = scmp.eq.s32.totalorder %s20, 1
      %p37 = por %p35, %p36
      %p38 = scmp.ne.s32.totalorder %s30, %s33
      %p39 = scmp.eq.s32.totalorder %s20, 0
      %p40 = por %p38, %p39
      %p41 = scmp.ne.s32.totalorder %s30, %s33
      %p42 = scmp.eq.s32.totalorder %s25, 1
      %p43 = por %p41, %p42
      %p44 = scmp.ne.s32.totalorder %s33, %s34
      %p45 = scmp.eq.s32.totalorder %s25, 0
      %p46 = por %p44, %p45
      %p47 = scmp.ne.s32.totalorder %s33, %s34
      %p48 = scmp.eq.s32.totalorder %s26, 1
      %p49 = por %p47, %p48
      %p51 = scmp.ne.s32.totalorder %s34, %s50
      %p52 = scmp.eq.s32.totalorder %s26, 0
      %p53 = por %p51, %p52
      %s55 = sadd.s32 %s54, 1
      %p58 = scmp.eq.s32.totalorder %s20, 1
      %p59 = scmp.ne.s32.totalorder %s54, %s56
      %p60 = scmp.eq.s32.totalorder %s20, 0
      %p61 = por %p59, %p60
      %p62 = scmp.ne.s32.totalorder %s54, %s56
      %p63 = scmp.eq.s32.totalorder %s25, 1
      %p64 = por %p62, %p63
      %p65 = scmp.ne.s32.totalorder %s56, %s57
      %p66 = scmp.eq.s32.totalorder %s25, 0
      %p67 = por %p65, %p66
      %p68 = scmp.ne.s32.totalorder %s56, %s57
      %p69 = scmp.eq.s32.totalorder %s26, 1
      %p70 = por %p68, %p69
      %p72 = scmp.ne.s32.totalorder %s57, %s71
      %p73 = scmp.eq.s32.totalorder %s26, 0
      %p74 = por %p72, %p73
      %s76 = sadd.s32 %s75, 1
      %p79 = scmp.eq.s32.totalorder %s20, 1
      %p80 = scmp.ne.s32.totalorder %s75, %s77
      %p81 = scmp.eq.s32.totalorder %s20, 0
      %p82 = por %p80, %p81
      %p83 = scmp.ne.s32.totalorder %s75, %s77
      %p84 = scmp.eq.s32.totalorder %s25, 1
      %p85 = por %p83, %p84
      %p86 = scmp.ne.s32.totalorder %s77, %s78
      %p87 = scmp.eq.s32.totalorder %s25, 0
      %p88 = por %p86, %p87
      %p89 = scmp.ne.s32.totalorder %s77, %s78
      %p90 = scmp.eq.s32.totalorder %s26, 1
      %p91 = por %p89, %p90
      %p93 = scmp.ne.s32.totalorder %s78, %s92
      %p94 = scmp.eq.s32.totalorder %s26, 0
      %p95 = por %p93, %p94
      %s97 = sadd.s32 %s96, 1
      %p100 = scmp.eq.s32.totalorder %s20, 1
      %p101 = scmp.ne.s32.totalorder %s96, %s98
      %p102 = scmp.eq.s32.totalorder %s20, 0
      %p103 = por %p101, %p102
      %p104 = scmp.ne.s32.totalorder %s96, %s98
      %p105 = scmp.eq.s32.totalorder %s25, 1
      %p106 = por %p104, %p105
      %p107 = scmp.ne.s32.totalorder %s98, %s99
      %p108 = scmp.eq.s32.totalorder %s25, 0
      %p109 = por %p107, %p108
      %p110 = scmp.ne.s32.totalorder %s98, %s99
      %p111 = scmp.eq.s32.totalorder %s26, 1
      %p112 = por %p110, %p111
      %p114 = scmp.ne.s32.totalorder %s99, %s113
      %p115 = scmp.eq.s32.totalorder %s26, 0
      %p116 = por %p114, %p115
      %s118 = sadd.s32 %s117, 1
      %p121 = scmp.eq.s32.totalorder %s20, 1
      %p122 = scmp.ne.s32.totalorder %s117, %s119
      %p123 = scmp.eq.s32.totalorder %s20, 0
      %p124 = por %p122, %p123
      %p125 = scmp.ne.s32.totalorder %s117, %s119
      %p126 = scmp.eq.s32.totalorder %s25, 1
      %p127 = por %p125, %p126
      %p128 = scmp.ne.s32.totalorder %s119, %s120
      %p129 = scmp.eq.s32.totalorder %s25, 0
      %p130 = por %p128, %p129
      %p131 = scmp.ne.s32.totalorder %s119, %s120
      %p132 = scmp.eq.s32.totalorder %s26, 1
      %p133 = por %p131, %p132
      %p135 = scmp.ne.s32.totalorder %s120, %s134
      %p136 = scmp.eq.s32.totalorder %s26, 0
      %p137 = por %p135, %p136
      %s138 = ssub.s32 %s20, %s27
      %p139 = scmp.eq.s32.totalorder %s138, 0
      %s141 = sadd.s32 %s140, 1
      %s142 = scalar_select %p139, %s140, %s141
      %p145 = pneg %p139
      %p146 = scmp.eq.s32.totalorder %s20, 1
      %p147 = por %p145, %p146
      %p148 = scmp.ne.s32.totalorder %s140, %s143
      %p149 = scmp.eq.s32.totalorder %s20, 0
      %p150 = por %p148, %p149
      %p151 = scmp.ne.s32.totalorder %s140, %s143
      %p152 = scmp.eq.s32.totalorder %s25, 1
      %p153 = por %p151, %p152
      %p154 = scmp.ne.s32.totalorder %s143, %s144
      %p155 = scmp.eq.s32.totalorder %s25, 0
      %p156 = por %p154, %p155
      %p157 = scmp.ne.s32.totalorder %s143, %s144
      %p158 = scmp.eq.s32.totalorder %s26, 1
      %p159 = por %p157, %p158
      %p161 = scmp.ne.s32.totalorder %s144, %s160
      %p162 = scmp.eq.s32.totalorder %s26, 0
      %p163 = por %p161, %p162
      %s164 = ssub.s32 %s20, %s27
      %p165 = scmp.eq.s32.totalorder %s164, 0
      %s167 = sadd.s32 %s166, 1
      %s168 = scalar_select %p165, %s166, %s167
      %p171 = pneg %p165
      %p172 = scmp.eq.s32.totalorder %s20, 1
      %p173 = por %p171, %p172
      %p174 = scmp.ne.s32.totalorder %s166, %s169
      %p175 = scmp.eq.s32.totalorder %s20, 0
      %p176 = por %p174, %p175
      %p177 = scmp.ne.s32.totalorder %s166, %s169
      %p178 = scmp.eq.s32.totalorder %s25, 1
      %p179 = por %p177, %p178
      %p180 = scmp.ne.s32.totalorder %s169, %s170
      %p181 = scmp.eq.s32.totalorder %s25, 0
      %p182 = por %p180, %p181
      %p183 = scmp.ne.s32.totalorder %s169, %s170
      %p184 = scmp.eq.s32.totalorder %s26, 1
      %p185 = por %p183, %p184
      %p187 = scmp.ne.s32.totalorder %s170, %s186
      %p188 = scmp.eq.s32.totalorder %s26, 0
      %p189 = por %p187, %p188
      %s190 = ssub.s32 %s20, %s27
      %p191 = scmp.eq.s32.totalorder %s190, 0
      %s193 = sadd.s32 %s192, 1
      %s194 = scalar_select %p191, %s192, %s193
      %p197 = pneg %p191
      %p198 = scmp.eq.s32.totalorder %s20, 1
      %p199 = por %p197, %p198
      %p200 = scmp.ne.s32.totalorder %s192, %s195
      %p201 = scmp.eq.s32.totalorder %s20, 0
      %p202 = por %p200, %p201
      %p203 = scmp.ne.s32.totalorder %s192, %s195
      %p204 = scmp.eq.s32.totalorder %s25, 1
      %p205 = por %p203, %p204
      %p206 = scmp.ne.s32.totalorder %s195, %s196
      %p207 = scmp.eq.s32.totalorder %s25, 0
      %p208 = por %p206, %p207
      %p209 = scmp.ne.s32.totalorder %s195, %s196
      %p210 = scmp.eq.s32.totalorder %s26, 1
      %p211 = por %p209, %p210
      %p213 = scmp.ne.s32.totalorder %s196, %s212
      %p214 = scmp.eq.s32.totalorder %s26, 0
      %p215 = por %p213, %p214
      %p216 = scmp.le.s32.totalorder 1, %s20
      %p217 = scmp.lt.s32.totalorder %s20, 3
      %p218 = pnand %p216, %p217
      %p219 = pneg %p218
      // Predicated region
      $region9: #{channel_ctx_feq_forward.1} parent=5 // pred_check
        _
      $region10: #{channel_ctx_feq_forward.1} parent=5 // pred_check_branch
        %221 = sbr.rel (%p218) target = $region12
      $region11: #{channel_ctx_feq_forward.1} parent=5 // pred_region
        %s222 = ssub.s32 %s20, 1
        // Predicated region
        $region13: #{channel_ctx_feq_forward.1} parent=11 // pred_check
          %p223 = pneg %p67
        $region14: #{channel_ctx_feq_forward.1} parent=11 // pred_check_branch
          %225 = sbr.rel (%p223) target = $region16
        $region15: #{channel_ctx_feq_forward.1} parent=11 // pred_region
          _
        $region16: #{channel_ctx_feq_forward.1} parent=11 // pred_fallthru
          _
        // Predicated region
        $region17: #{channel_ctx_feq_forward.1} parent=11 // pred_check
          %p226 = pneg %p88
        $region18: #{channel_ctx_feq_forward.1} parent=11 // pred_check_branch
          %228 = sbr.rel (%p226) target = $region20
        $region19: #{channel_ctx_feq_forward.1} parent=11 // pred_region
          _
        $region20: #{channel_ctx_feq_forward.1} parent=11 // pred_fallthru
          _
        // Predicated region
        $region21: #{channel_ctx_feq_forward.1} parent=11 // pred_check
          %p229 = pneg %p109
        $region22: #{channel_ctx_feq_forward.1} parent=11 // pred_check_branch
          %231 = sbr.rel (%p229) target = $region24
        $region23: #{channel_ctx_feq_forward.1} parent=11 // pred_region
          _
        $region24: #{channel_ctx_feq_forward.1} parent=11 // pred_fallthru
          _
        // Predicated region
        $region25: #{channel_ctx_feq_forward.1} parent=11 // pred_check
          %p232 = pneg %p130
        $region26: #{channel_ctx_feq_forward.1} parent=11 // pred_check_branch
          %234 = sbr.rel (%p232) target = $region28
        $region27: #{channel_ctx_feq_forward.1} parent=11 // pred_region
          _
        $region28: #{channel_ctx_feq_forward.1} parent=11 // pred_fallthru
          _
      $region12: #{channel_ctx_feq_forward.1} parent=5 // pred_fallthru
        _
      %p235 = scmp.lt.s32.totalorder %s20, 2
      // Predicated region
      $region29: #{channel_ctx_feq_forward.1} parent=5 // pred_check
        %p236 = pneg %p235
      $region30: #{channel_ctx_feq_forward.1} parent=5 // pred_check_branch
        %238 = sbr.rel (%p236) target = $region32
      $region31: #{channel_ctx_feq_forward.1} parent=5 // pred_region
        // Predicated region
        $region33: #{channel_ctx_feq_forward.1} parent=31 // pred_check
          %p239 = pneg %p40
        $region34: #{channel_ctx_feq_forward.1} parent=31 // pred_check_branch
          %241 = sbr.rel (%p239) target = $region36
        $region35: #{channel_ctx_feq_forward.1} parent=31 // pred_region
          %s242 = smul.u32 2, %s20
          %s243 = ssub.s32 3, %s242
          %p244 = scmp.lt.s32.totalorder %s243, 2
          %s245 = scalar_select %p244, %s243, 2
          %s246 = smul.u32 128, %s245
          %p247 = scmp.lt.s32.totalorder %s242, 2
          %s248 = scalar_select %p247, %s242, 2
          %s249 = smul.addr %s248, 8
          %s250 = scalar_lea.vmem %s0, %s249
          %s251 = smul.u32 2, %s20
          %s252 = ssub.s32 3, %s251
          %p253 = scmp.lt.s32.totalorder %s252, 2
          %s254 = scalar_select %p253, %s252, 2
          %s255 = smul.u32 128, %s254
        $region36: #{channel_ctx_feq_forward.1} parent=31 // pred_fallthru
          _
      $region32: #{channel_ctx_feq_forward.1} parent=5 // pred_fallthru
        _
      %p256 = scmp.le.s32.totalorder 1, %s20
      %p257 = scmp.lt.s32.totalorder %s20, 3
      %p258 = pnand %p256, %p257
      %p259 = pneg %p258
      // Predicated region
      $region37: #{channel_ctx_feq_forward.1} parent=5 // pred_check
        _
      $region38: #{channel_ctx_feq_forward.1} parent=5 // pred_check_branch
        %261 = sbr.rel (%p258) target = $region40
      $region39: #{channel_ctx_feq_forward.1} parent=5 // pred_region
        %s262 = ssub.s32 %s20, 1
        %s263 = smul.u32 2, %s25
        %s264 = ssub.s32 3, %s263
        %p265 = scmp.lt.s32.totalorder %s264, 2
        %s266 = scalar_select %p265, %s264, 2
        %s267 = smul.u32 128, %s266
        %p268 = scmp.lt.s32.totalorder %s263, 2
        %s269 = scalar_select %p268, %s263, 2
        %s270 = smul.addr %s269, 8
        %s271 = scalar_lea.vmem %s0, %s270
        %p272 = pneg %p46
        %p273 = pneg %p43
        %p274 = pneg %p67
        %p275 = pneg %p64
        %p276 = pneg %p88
        %p277 = pneg %p85
        %p278 = pneg %p109
        %p279 = pneg %p106
        %p280 = pneg %p130
        %p281 = pneg %p127
        %p282 = pneg %p156
        %p283 = pneg %p153
        %s284 = sand.u32 %s143, 1
        %s285 = scalar_lea.sflag [#allocation3], %s284
        %s286 = sand.u32 %s143, 1
        %s287 = smul.addr %s286, 16
        %s288 = scalar_lea.vmem [#allocation2], %s287
        %p289 = pneg %p182
        %p290 = pneg %p179
        %s291 = sand.u32 %s25, 1
        %s292 = scalar_lea.sflag [#allocation5], %s291
        %s293 = sand.u32 %s169, 1
        %s294 = smul.addr %s293, 16
        %s295 = scalar_lea.vmem [#allocation4], %s294
        %p296 = pneg %p208
        %p297 = pneg %p205
        %s298 = sand.u32 %s25, 1
        %s299 = scalar_lea.sflag [#allocation5], %s298
        %s300 = sand.u32 %s195, 1
        %s301 = smul.addr %s300, 16
        %s302 = scalar_lea.vmem [#allocation6], %s301
        %s303 = smul.u32 2, %s25
        %s304 = ssub.s32 3, %s303
        %p305 = scmp.lt.s32.totalorder %s304, 2
        %s306 = scalar_select %p305, %s304, 2
        %s307 = smul.u32 128, %s306
        %p308 = scmp.lt.s32.totalorder %s303, 2
        %s309 = scalar_select %p308, %s303, 2
        %s310 = smul.addr %s309, 8
        %s311 = scalar_lea.vmem %s0, %s310
        %s312 = smul.u32 2, %s25
        %s313 = ssub.s32 3, %s312
        %p314 = scmp.lt.s32.totalorder %s313, 2
        %s315 = scalar_select %p314, %s313, 2
        %s316 = smul.u32 128, %s315
        %s317 = smul.u32 2, %s25
        %s318 = ssub.s32 3, %s317
        %p319 = scmp.lt.s32.totalorder %s318, 2
        %s320 = scalar_select %p319, %s318, 2
        %s321 = smul.u32 128, %s320
        %s322 = smul.u32 2, %s25
        %s323 = ssub.s32 3, %s322
        %p324 = scmp.lt.s32.totalorder %s323, 2
        %s325 = scalar_select %p324, %s323, 2
        %s326 = smul.u32 128, %s325
        %s327 = smul.u32 2, %s25
        %s328 = ssub.s32 3, %s327
        %p329 = scmp.lt.s32.totalorder %s328, 2
        %s330 = scalar_select %p329, %s328, 2
        %s331 = smul.u32 128, %s330
        %v332 = vld [vmem:[%s4] sm:$0x77]
        %v333 = vld [vmem:[%s311] sm:$0xff]
        %v334 = vld [vmem:[%s311 + $0x8] sm:$0xff]
        %v335 = vld [vmem:[%s1] sm:$0xff]
        %v336 = vld [vmem:[%s1 + $0x8] sm:$0xff]
        %v337 = vld [vmem:[%s1 + $0x10] sm:$0xff]
        %v338 = vld [vmem:[%s1 + $0x18] sm:$0xff]
        %v339 = vld [vmem:[%s1 + $0x20] sm:$0xff]
        %v340 = vld [vmem:[%s1 + $0x28] sm:$0xff]
        %v341 = vlaneseq
        %v342 = vshrl.u32 %v341, 7
        %v343 = vsub.s32 0, %v342
        %v344 = vrot.slane %v332, %v343
        %vm345 = vcmask 392192
        %v347 = vsel %vm345, %v333, 0
        %v350 = vsel %vm345, %v334, 0
        %352 = vmatprep.subr.mxu0 0.0
        %353 = vmatpush1.msra.mxu0 %v335
        %354 = vmatprep.subr.mxu0 0.0
        %355 = vmatpush1.msra.mxu0 %v336
        %356 = vmatprep.subr.mxu0 0.0
        %357 = vmatpush1.msra.mxu0 %v337
        %358 = vmatprep.subr.mxu0 0.0
        %359 = vmatpush1.msra.mxu0 %v338
        %360 = vmatprep.subr.mxu0 0.0
        %361 = vmatpush1.msra.mxu0 %v339
        %362 = vmatprep.subr.mxu0 0.0
        %363 = vmatpush1.msra.mxu0 %v340
        %364 = vmatprep.subr.mxu0 0.0
        %365 = vmatpush1.msra.mxu0 0.0
        %366 = vmatprep.subr.mxu0 0.0
        %367 = vmatpush1.msra.mxu0 0.0
        %368 = vmatprep.subr.mxu0 0.0
        %369 = vmatpush1.msra.mxu0 0.0
        %370 = vmatprep.subr.mxu0 0.0
        %371 = vmatpush1.msra.mxu0 0.0
        %372 = vmatprep.subr.mxu0 0.0
        %373 = vmatpush1.msra.mxu0 0.0
        %374 = vmatprep.subr.mxu0 0.0
        %375 = vmatpush1.msra.mxu0 0.0
        %376 = vmatprep.subr.mxu0 0.0
        %377 = vmatpush1.msra.mxu0 0.0
        %378 = vmatprep.subr.mxu0 0.0
        %379 = vmatpush1.msra.mxu0 0.0
        %380 = vmatprep.subr.mxu0 0.0
        %381 = vmatpush1.msra.mxu0 0.0
        %382 = vmatprep.subr.mxu0 0.0
        %383 = vmatpush1.msra.mxu0 0.0
        %384 = vmatprep.subr.mxu0 0.0
        %385 = vmatpush1.msra.mxu0 0.0
        %386 = vmatprep.subr.mxu0 0.0
        %387 = vmatpush1.msra.mxu0 0.0
        %388 = vmatprep.subr.mxu0 0.0
        %389 = vmatpush1.msra.mxu0 0.0
        %390 = vmatprep.subr.mxu0 0.0
        %391 = vmatpush1.msra.mxu0 0.0
        %392 = vmatprep.subr.mxu0 0.0
        %393 = vmatpush1.msra.mxu0 0.0
        %394 = vmatprep.subr.mxu0 0.0
        %395 = vmatpush1.msra.mxu0 0.0
        %396 = vmatprep.subr.mxu0 0.0
        %397 = vmatpush1.msra.mxu0 0.0
        %398 = vmatprep.subr.mxu0 0.0
        %399 = vmatpush1.msra.mxu0 0.0
        %400 = vmatprep.subr.mxu0 0.0
        %401 = vmatpush1.msra.mxu0 0.0
        %402 = vmatprep.subr.mxu0 0.0
        %403 = vmatpush1.msra.mxu0 0.0
        %404 = vmatprep.subr.mxu0 0.0
        %405 = vmatpush1.msra.mxu0 0.0
        %406 = vmatprep.subr.mxu0 0.0
        %407 = vmatpush1.msra.mxu0 0.0
        %408 = vmatprep.subr.mxu0 0.0
        %409 = vmatpush1.msra.mxu0 0.0
        %410 = vmatprep.subr.mxu0 0.0
        %411 = vmatpush1.msra.mxu0 0.0
        %412 = vmatprep.subr.mxu0 0.0
        %413 = vmatpush1.msra.mxu0 0.0
        %414 = vmatprep.subr.mxu0 0.0
        %415 = vmatpush1.msra.mxu0 0.0
        %416 = vmatprep.mubr.f32.mxu0 0.0
        %417 = vmatmul.mubr.f32.gmra.mrb[0].mxu0 %v347
        %v418 = vpop.f32.mrb[0].mxu0
        %v419 = vadd.f32 %v344, %v418
        %v420 = vpop.f32.mrb[0].mxu0
        %421 = vmatprep.mubr.f32.mxu0 0.0
        %422 = vmatmul.mubr.f32.gmra.mrb[0].mxu0 %v350
        %v423 = vpop.f32.mrb[0].mxu0
        %v424 = vadd.f32 %v344, %v423
        %v425 = vpop.f32.mrb[0].mxu0
        %426 = vdwg.mxu0
        %v427 = vmul.f32 %v419, 0.01
        %v428 = vmul.f32 %v424, 0.01
        %v429 = vmax.f32 %v419, %v427
        %v430 = vmax.f32 %v424, %v428
        %v431 = vld [vmem:[%s2] sm:$0xff]
        %v432 = vld [vmem:[%s2 + $0x8] sm:$0xff]
        %v433 = vld [vmem:[%s2 + $0x10] sm:$0xff]
        %v434 = vld [vmem:[%s2 + $0x18] sm:$0xff]
        %v435 = vld [vmem:[%s2 + $0x20] sm:$0xff]
        %v436 = vld [vmem:[%s2 + $0x28] sm:$0xff]
        %v437 = vld [vmem:[%s2 + $0x30] sm:$0xff]
        %v438 = vld [vmem:[%s2 + $0x38] sm:$0xff]
        %v439 = vld [vmem:[%s2 + $0x40] sm:$0xff]
        %v440 = vld [vmem:[%s2 + $0x48] sm:$0xff]
        %v441 = vld [vmem:[%s2 + $0x50] sm:$0xff]
        %v442 = vld [vmem:[%s2 + $0x58] sm:$0xff]
        %v443 = vlaneseq
        %v444 = vshrl.u32 %v443, 7
        %v445 = vsub.s32 1, %v444
        %v446 = vrot.slane %v332, %v445
        %vm447 = vcmask 785408
        %v449 = vsel %vm447, %v429, 0
        %v452 = vsel %vm447, %v430, 0
        %454 = vmatprep.subr.mxu0 0.0
        %455 = vmatpush1.msra.mxu0 %v431
        %456 = vmatprep.subr.mxu0 0.0
        %457 = vmatpush1.msra.mxu0 %v432
        %458 = vmatprep.subr.mxu0 0.0
        %459 = vmatpush1.msra.mxu0 %v433
        %460 = vmatprep.subr.mxu0 0.0
        %461 = vmatpush1.msra.mxu0 %v434
        %462 = vmatprep.subr.mxu0 0.0
        %463 = vmatpush1.msra.mxu0 %v435
        %464 = vmatprep.subr.mxu0 0.0
        %465 = vmatpush1.msra.mxu0 %v436
        %466 = vmatprep.subr.mxu0 0.0
        %467 = vmatpush1.msra.mxu0 %v437
        %468 = vmatprep.subr.mxu0 0.0
        %469 = vmatpush1.msra.mxu0 %v438
        %470 = vmatprep.subr.mxu0 0.0
        %471 = vmatpush1.msra.mxu0 %v439
        %472 = vmatprep.subr.mxu0 0.0
        %473 = vmatpush1.msra.mxu0 %v440
        %474 = vmatprep.subr.mxu0 0.0
        %475 = vmatpush1.msra.mxu0 %v441
        %476 = vmatprep.subr.mxu0 0.0
        %477 = vmatpush1.msra.mxu0 %v442
        %478 = vmatprep.subr.mxu0 0.0
        %479 = vmatpush1.msra.mxu0 0.0
        %480 = vmatprep.subr.mxu0 0.0
        %481 = vmatpush1.msra.mxu0 0.0
        %482 = vmatprep.subr.mxu0 0.0
        %483 = vmatpush1.msra.mxu0 0.0
        %484 = vmatprep.subr.mxu0 0.0
        %485 = vmatpush1.msra.mxu0 0.0
        %486 = vmatprep.subr.mxu0 0.0
        %487 = vmatpush1.msra.mxu0 0.0
        %488 = vmatprep.subr.mxu0 0.0
        %489 = vmatpush1.msra.mxu0 0.0
        %490 = vmatprep.subr.mxu0 0.0
        %491 = vmatpush1.msra.mxu0 0.0
        %492 = vmatprep.subr.mxu0 0.0
        %493 = vmatpush1.msra.mxu0 0.0
        %494 = vmatprep.subr.mxu0 0.0
        %495 = vmatpush1.msra.mxu0 0.0
        %496 = vmatprep.subr.mxu0 0.0
        %497 = vmatpush1.msra.mxu0 0.0
        %498 = vmatprep.subr.mxu0 0.0
        %499 = vmatpush1.msra.mxu0 0.0
        %500 = vmatprep.subr.mxu0 0.0
        %501 = vmatpush1.msra.mxu0 0.0
        %502 = vmatprep.subr.mxu0 0.0
        %503 = vmatpush1.msra.mxu0 0.0
        %504 = vmatprep.subr.mxu0 0.0
        %505 = vmatpush1.msra.mxu0 0.0
        %506 = vmatprep.subr.mxu0 0.0
        %507 = vmatpush1.msra.mxu0 0.0
        %508 = vmatprep.subr.mxu0 0.0
        %509 = vmatpush1.msra.mxu0 0.0
        %510 = vmatprep.subr.mxu0 0.0
        %511 = vmatpush1.msra.mxu0 0.0
        %512 = vmatprep.subr.mxu0 0.0
        %513 = vmatpush1.msra.mxu0 0.0
        %514 = vmatprep.subr.mxu0 0.0
        %515 = vmatpush1.msra.mxu0 0.0
        %516 = vmatprep.subr.mxu0 0.0
        %517 = vmatpush1.msra.mxu0 0.0
        %518 = vmatprep.mubr.f32.mxu0 0.0
        %519 = vmatmul.mubr.f32.gmra.mrb[0].mxu0 %v449
        %v520 = vpop.f32.mrb[0].mxu0
        %v521 = vadd.f32 %v446, %v520
        %v522 = vpop.f32.mrb[0].mxu0
        %523 = vmatprep.mubr.f32.mxu0 0.0
        %524 = vmatmul.mubr.f32.gmra.mrb[0].mxu0 %v452
        %v525 = vpop.f32.mrb[0].mxu0
        %v526 = vadd.f32 %v446, %v525
        %v527 = vpop.f32.mrb[0].mxu0
        %528 = vdwg.mxu0
        %v529 = vmul.f32 %v521, 0.01
        %v530 = vmul.f32 %v526, 0.01
        %v531 = vmax.f32 %v521, %v529
        %v532 = vmax.f32 %v526, %v530
        %v533 = vld [vmem:[%s3] sm:$0xff]
        %v534 = vld [vmem:[%s3 + $0x8] sm:$0xff]
        %v535 = vld [vmem:[%s3 + $0x10] sm:$0xff]
        %v536 = vld [vmem:[%s3 + $0x18] sm:$0xff]
        %v537 = vld [vmem:[%s3 + $0x20] sm:$0xff]
        %v538 = vld [vmem:[%s3 + $0x28] sm:$0xff]
        %v539 = vld [vmem:[%s3 + $0x30] sm:$0xff]
        %v540 = vld [vmem:[%s3 + $0x38] sm:$0xff]
        %v541 = vld [vmem:[%s3 + $0x40] sm:$0xff]
        %v542 = vld [vmem:[%s3 + $0x48] sm:$0xff]
        %v543 = vld [vmem:[%s3 + $0x50] sm:$0xff]
        %v544 = vld [vmem:[%s3 + $0x58] sm:$0xff]
        %v545 = vld [vmem:[%s3 + $0x60] sm:$0xff]
        %v546 = vld [vmem:[%s3 + $0x68] sm:$0xff]
        %v547 = vld [vmem:[%s3 + $0x70] sm:$0xff]
        %v548 = vld [vmem:[%s3 + $0x78] sm:$0xff]
        %v549 = vld [vmem:[%s3 + $0x80] sm:$0xff]
        %v550 = vld [vmem:[%s3 + $0x88] sm:$0xff]
        %v551 = vld [vmem:[%s3 + $0x90] sm:$0xff]
        %v552 = vld [vmem:[%s3 + $0x98] sm:$0xff]
        %v553 = vld [vmem:[%s3 + $0xa0] sm:$0xff]
        %v554 = vld [vmem:[%s3 + $0xa8] sm:$0xff]
        %v555 = vld [vmem:[%s3 + $0xb0] sm:$0xff]
        %v556 = vld [vmem:[%s3 + $0xb8] sm:$0xff]
        %v558 = vlaneseq
        %v559 = vshrl.u32 %v558, 7
        %v560 = vsub.s32 2, %v559
        %v561 = vrot.slane %v332, %v560
        %v562 = vlaneseq
        %v563 = vshrl.u32 %v562, 7
        %v564 = vsub.s32 6, %v563
        %v565 = vrot.slane %v332, %v564
        %v568 = vlaneseq
        %v569 = vshrl.u32 %v568, 7
        %v570 = vsub.s32 2, %v569
        %v571 = vrot.slane %v561, %v570
        %v572 = vlaneseq
        %v573 = vshrl.u32 %v572, 7
        %v574 = vsub.s32 2, %v573
        %v575 = vrot.slane %v565, %v574
        %v577 = vsel %vm447, %v531, 0
        %v580 = vsel %vm447, %v532, 0
        %582 = vmatprep.subr.mxu0 %v534
        %583 = vmatpush1.msra.mxu0 %v533
        %584 = vmatprep.subr.mxu0 %v536
        %585 = vmatpush1.msra.mxu0 %v535
        %586 = vmatprep.subr.mxu0 %v538
        %587 = vmatpush1.msra.mxu0 %v537
        %588 = vmatprep.subr.mxu0 %v540
        %589 = vmatpush1.msra.mxu0 %v539
        %590 = vmatprep.subr.mxu0 %v542
        %591 = vmatpush1.msra.mxu0 %v541
        %592 = vmatprep.subr.mxu0 %v544
        %593 = vmatpush1.msra.mxu0 %v543
        %594 = vmatprep.subr.mxu0 %v546
        %595 = vmatpush1.msra.mxu0 %v545
        %596 = vmatprep.subr.mxu0 %v548
        %597 = vmatpush1.msra.mxu0 %v547
        %598 = vmatprep.subr.mxu0 %v550
        %599 = vmatpush1.msra.mxu0 %v549
        %600 = vmatprep.subr.mxu0 %v552
        %601 = vmatpush1.msra.mxu0 %v551
        %602 = vmatprep.subr.mxu0 %v554
        %603 = vmatpush1.msra.mxu0 %v553
        %604 = vmatprep.subr.mxu0 %v556
        %605 = vmatpush1.msra.mxu0 %v555
        %606 = vmatprep.subr.mxu0 0.0
        %607 = vmatpush1.msra.mxu0 0.0
        %608 = vmatprep.subr.mxu0 0.0
        %609 = vmatpush1.msra.mxu0 0.0
        %610 = vmatprep.subr.mxu0 0.0
        %611 = vmatpush1.msra.mxu0 0.0
        %612 = vmatprep.subr.mxu0 0.0
        %613 = vmatpush1.msra.mxu0 0.0
        %614 = vmatprep.subr.mxu0 0.0
        %615 = vmatpush1.msra.mxu0 0.0
        %616 = vmatprep.subr.mxu0 0.0
        %617 = vmatpush1.msra.mxu0 0.0
        %618 = vmatprep.subr.mxu0 0.0
        %619 = vmatpush1.msra.mxu0 0.0
        %620 = vmatprep.subr.mxu0 0.0
        %621 = vmatpush1.msra.mxu0 0.0
        %622 = vmatprep.subr.mxu0 0.0
        %623 = vmatpush1.msra.mxu0 0.0
        %624 = vmatprep.subr.mxu0 0.0
        %625 = vmatpush1.msra.mxu0 0.0
        %626 = vmatprep.subr.mxu0 0.0
        %627 = vmatpush1.msra.mxu0 0.0
        %628 = vmatprep.subr.mxu0 0.0
        %629 = vmatpush1.msra.mxu0 0.0
        %630 = vmatprep.subr.mxu0 0.0
        %631 = vmatpush1.msra.mxu0 0.0
        %632 = vmatprep.subr.mxu0 0.0
        %633 = vmatpush1.msra.mxu0 0.0
        %634 = vmatprep.subr.mxu0 0.0
        %635 = vmatpush1.msra.mxu0 0.0
        %636 = vmatprep.subr.mxu0 0.0
        %637 = vmatpush1.msra.mxu0 0.0
        %638 = vmatprep.subr.mxu0 0.0
        %639 = vmatpush1.msra.mxu0 0.0
        %640 = vmatprep.subr.mxu0 0.0
        %641 = vmatpush1.msra.mxu0 0.0
        %642 = vmatprep.subr.mxu0 0.0
        %643 = vmatpush1.msra.mxu0 0.0
        %644 = vmatprep.subr.mxu0 0.0
        %645 = vmatpush1.msra.mxu0 0.0
        %646 = vmatprep.mubr.f32.mxu0 0.0
        %647 = vmatmul.mubr.f32.gmra.mrb[0].mxu0 %v577
        %v648 = vpop.f32.mrb[0].mxu0
        %v649 = vadd.f32 %v571, %v648
        %v650 = vpop.f32.mrb[0].mxu0
        %v651 = vadd.f32 %v575, %v650
        %652 = vmatprep.mubr.f32.mxu0 0.0
        %653 = vmatmul.mubr.f32.gmra.mrb[0].mxu0 %v580
        %v654 = vpop.f32.mrb[0].mxu0
        %v655 = vadd.f32 %v571, %v654
        %v656 = vpop.f32.mrb[0].mxu0
        %v657 = vadd.f32 %v575, %v656
        %658 = vdwg.mxu0
        %659 = vst.msk [vmem:[%s288] sm:$0xff] %vm345, %v649
        %660 = vst.msk [vmem:[%s288 + $0x8] sm:$0xff] %vm345, %v655
        %663 = vrot.lane.b32.xlu0 %v649, 80
        %v664 = vpop.permute.xlu0 %663
        %665 = vrot.lane.b32.xlu0 %v655, 80
        %v666 = vpop.permute.xlu0 %665
        %669 = vst.msk [vmem:[%s295] sm:$0xff] %vm345, %v664
        %670 = vst.msk [vmem:[%s295 + $0x8] sm:$0xff] %vm345, %v666
        %673 = vrot.lane.b32.xlu0 %v649, 32
        %v674 = vpop.permute.xlu0 %673
        %675 = vrot.lane.b32.xlu0 %v651, 32
        %v676 = vpop.permute.xlu0 %675
        %677 = vrot.lane.b32.xlu0 %v655, 32
        %v678 = vpop.permute.xlu0 %677
        %679 = vrot.lane.b32.xlu0 %v657, 32
        %v680 = vpop.permute.xlu0 %679
        %vm681 = vcmask 261120
        %v682 = vsel %vm681, %v674, %v676
        %v683 = vsel %vm681, %v678, %v680
        %686 = vst.msk [vmem:[%s302] sm:$0xff] %vm345, %v682
        %687 = vst.msk [vmem:[%s302 + $0x8] sm:$0xff] %vm345, %v683
        %s688 = sand.u32 %s143, 1
        %s689 = scalar_lea.sflag [#allocation3], %s688
        %s690 = sand.u32 %s143, 1
        %s691 = smul.addr %s690, 16
        %s692 = scalar_lea.vmem [#allocation2], %s691
        %s693 = sand.u32 %s25, 1
        %s694 = scalar_lea.sflag [#allocation5], %s693
        %s695 = sand.u32 %s169, 1
        %s696 = smul.addr %s695, 16
        %s697 = scalar_lea.vmem [#allocation4], %s696
        %s698 = sand.u32 %s25, 1
        %s699 = scalar_lea.sflag [#allocation5], %s698
        %s700 = sand.u32 %s195, 1
        %s701 = smul.addr %s700, 16
        %s702 = scalar_lea.vmem [#allocation6], %s701
        // Predicated region
        $region41: #{channel_ctx_feq_forward.1} parent=39 // pred_check
          %p703 = pneg %p153
        $region42: #{channel_ctx_feq_forward.1} parent=39 // pred_check_branch
          %705 = sbr.rel (%p703) target = $region44
        $region43: #{channel_ctx_feq_forward.1} parent=39 // pred_region
          %s706 = smul.u32 2, %s25
          %s707 = ssub.s32 3, %s706
          %p708 = scmp.lt.s32.totalorder %s707, 2
          %s709 = scalar_select %p708, %s707, 2
          %s710 = smul.u32 128, %s709
          %s712 = ssub.s32 256, %s710
          %713 = vsyncadd %s689, %s712
          %p714 = scmp.ne.s32.totalorder 0, %s710
          %s715 = smul.addr %s706, 128
          %s716 = scalar_lea.hbm %s5, %s715
          %s717 = smul.u32 8, %s709
          %s718 = sshll.u32 %s692, 4
          %s719 = int_to_ptr.vmem [resolvable:$true] %s718
          %s720 = sshll.u32 %s717, 4
          %724 = dma.vmem_to_hbm [thread:$0]  (%p714), %s719, %s720, %s716, %s689, 128, 128, 8
        $region44: #{channel_ctx_feq_forward.1} parent=39 // pred_fallthru
          _
        // Predicated region
        $region45: #{channel_ctx_feq_forward.1} parent=39 // pred_check
          %p725 = pneg %p179
        $region46: #{channel_ctx_feq_forward.1} parent=39 // pred_check_branch
          %727 = sbr.rel (%p725) target = $region48
        $region47: #{channel_ctx_feq_forward.1} parent=39 // pred_region
          %s728 = smul.u32 2, %s25
          %s729 = ssub.s32 3, %s728
          %p730 = scmp.lt.s32.totalorder %s729, 2
          %s731 = scalar_select %p730, %s729, 2
          %s732 = smul.u32 128, %s731
          %s734 = ssub.s32 256, %s732
          %735 = vsyncadd %s694, %s734
          %p736 = scmp.ne.s32.totalorder 0, %s732
          %s737 = smul.addr %s728, 128
          %s738 = scalar_lea.hbm %s6, %s737
          %s739 = smul.u32 8, %s731
          %s740 = sshll.u32 %s697, 4
          %s741 = int_to_ptr.vmem [resolvable:$true] %s740
          %s742 = sshll.u32 %s739, 4
          %746 = dma.vmem_to_hbm [thread:$0]  (%p736), %s741, %s742, %s738, %s694, 128, 128, 8
        $region48: #{channel_ctx_feq_forward.1} parent=39 // pred_fallthru
          _
        // Predicated region
        $region49: #{channel_ctx_feq_forward.1} parent=39 // pred_check
          %p747 = pneg %p205
        $region50: #{channel_ctx_feq_forward.1} parent=39 // pred_check_branch
          %749 = sbr.rel (%p747) target = $region52
        $region51: #{channel_ctx_feq_forward.1} parent=39 // pred_region
          %s750 = smul.u32 2, %s25
          %s751 = ssub.s32 3, %s750
          %p752 = scmp.lt.s32.totalorder %s751, 2
          %s753 = scalar_select %p752, %s751, 2
          %s754 = smul.u32 128, %s753
          %s756 = ssub.s32 256, %s754
          %757 = vsyncadd %s699, %s756
          %p758 = scmp.ne.s32.totalorder 0, %s754
          %s759 = smul.addr %s750, 128
          %s760 = scalar_lea.hbm %s7, %s759
          %s761 = smul.u32 8, %s753
          %s762 = sshll.u32 %s702, 4
          %s763 = int_to_ptr.vmem [resolvable:$true] %s762
          %s764 = sshll.u32 %s761, 4
          %768 = dma.vmem_to_hbm [thread:$0]  (%p758), %s763, %s764, %s760, %s699, 128, 128, 8
        $region52: #{channel_ctx_feq_forward.1} parent=39 // pred_fallthru
          _
      $region40: #{channel_ctx_feq_forward.1} parent=5 // pred_fallthru
        _
      %p769 = scmp.le.s32.totalorder 2, %s20
      // Predicated region
      $region53: #{channel_ctx_feq_forward.1} parent=5 // pred_check
        %p770 = pneg %p769
      $region54: #{channel_ctx_feq_forward.1} parent=5 // pred_check_branch
        %772 = sbr.rel (%p770) target = $region56
      $region55: #{channel_ctx_feq_forward.1} parent=5 // pred_region
        %s773 = ssub.s32 %s20, 2
        // Predicated region
        $region57: #{channel_ctx_feq_forward.1} parent=55 // pred_check
          %p774 = pneg %p159
        $region58: #{channel_ctx_feq_forward.1} parent=55 // pred_check_branch
          %776 = sbr.rel (%p774) target = $region60
        $region59: #{channel_ctx_feq_forward.1} parent=55 // pred_region
          %s777 = sand.u32 %s144, 1
          %s778 = scalar_lea.sflag [#allocation3], %s777
          %s779 = sand.u32 %s144, 1
          %s780 = smul.addr %s779, 16
          %s781 = scalar_lea.vmem [#allocation2], %s780
          %782 = dma.done %s778, 256
        $region60: #{channel_ctx_feq_forward.1} parent=55 // pred_fallthru
          _
        // Predicated region
        $region61: #{channel_ctx_feq_forward.1} parent=55 // pred_check
          %p783 = pneg %p185
        $region62: #{channel_ctx_feq_forward.1} parent=55 // pred_check_branch
          %785 = sbr.rel (%p783) target = $region64
        $region63: #{channel_ctx_feq_forward.1} parent=55 // pred_region
          %s786 = sand.u32 %s26, 1
          %s787 = scalar_lea.sflag [#allocation5], %s786
          %s788 = sand.u32 %s170, 1
          %s789 = smul.addr %s788, 16
          %s790 = scalar_lea.vmem [#allocation4], %s789
          %791 = dma.done %s787, 256
        $region64: #{channel_ctx_feq_forward.1} parent=55 // pred_fallthru
          _
        // Predicated region
        $region65: #{channel_ctx_feq_forward.1} parent=55 // pred_check
          %p792 = pneg %p211
        $region66: #{channel_ctx_feq_forward.1} parent=55 // pred_check_branch
          %794 = sbr.rel (%p792) target = $region68
        $region67: #{channel_ctx_feq_forward.1} parent=55 // pred_region
          %s795 = sand.u32 %s26, 1
          %s796 = scalar_lea.sflag [#allocation5], %s795
          %s797 = sand.u32 %s196, 1
          %s798 = smul.addr %s797, 16
          %s799 = scalar_lea.vmem [#allocation6], %s798
          %800 = dma.done %s796, 256
        $region68: #{channel_ctx_feq_forward.1} parent=55 // pred_fallthru
          _
      $region56: #{channel_ctx_feq_forward.1} parent=5 // pred_fallthru
        _
    $region6: #{channel_ctx_feq_forward.1} parent=1 // loop_footer
      %s24 = sadd.s32 1, %s20
    $region7: #{channel_ctx_feq_forward.1} parent=1 // loop_footer_branch
      %19 = sbr.rel target = $region3
    $region8: #{channel_ctx_feq_forward.1} parent=1 // loop_exit
      _
    %801 = vsyncpa [#allocation3], 1
    %s802 = scalar_lea.sflag [#allocation3], 1
    %803 = vsyncpa %s802, 1
    %804 = vsyncpa [#allocation5], 1
    %s805 = scalar_lea.sflag [#allocation5], 1
    %806 = vsyncpa %s805, 1

</llo_original>
